<compile_context>
chip_gen: v7x
topology: tpu7x:2x2x1
jax: 0.10.0
libtpu: 0.0.40
codegen_flags: <defaults>
</compile_context>

<pallas_src>
import functools

import jax
import jax.numpy as jnp
from jax.experimental import pallas as pl
from jax.experimental.pallas import tpu as pltpu


def _round_up(a: int, m: int) -> int:
    return (a + m - 1) // m * m


def _matmul_kernel(x_ref, w_ref, o_ref, acc_ref):
    """One (tm, tn) output tile; K is the last ("arbitrary") grid axis."""

    @pl.when(pl.program_id(2) == 0)
    def _():
        acc_ref[...] = jnp.zeros_like(acc_ref)

    acc_ref[...] += jnp.dot(
        x_ref[...], w_ref[...], preferred_element_type=jnp.float32
    )

    @pl.when(pl.program_id(2) == pl.num_programs(2) - 1)
    def _():
        o_ref[...] = acc_ref[...]  # output dtype is f32 -> no cast needed


def _tiled_linear(x_pad, w_t_pad, tm, tn, tk):
    """y_pad = x_pad @ w_t_pad with padded, tile-aligned shapes (f32 out)."""
    m, k = x_pad.shape
    k2, n = w_t_pad.shape
    assert k == k2 and m % tm == 0 and n % tn == 0 and k % tk == 0
    grid = (m // tm, n // tn, k // tk)
    return pl.pallas_call(
        _matmul_kernel,
        out_shape=jax.ShapeDtypeStruct((m, n), jnp.float32),
        grid=grid,
        in_specs=[
            pl.BlockSpec((tm, tk), lambda i, j, kk: (i, kk)),
            pl.BlockSpec((tk, tn), lambda i, j, kk: (kk, j)),
        ],
        out_specs=pl.BlockSpec((tm, tn), lambda i, j, kk: (i, j)),
        scratch_shapes=[pltpu.VMEM((tm, tn), jnp.float32)],
        compiler_params=pltpu.CompilerParams(
            dimension_semantics=("parallel", "parallel", "arbitrary")
        ),
    )(x_pad, w_t_pad)


def make_cnn_online_forward(w, *, tm=256, tn=512, tk=512, compute_dtype=None):
    """Build the forward fn for CnnOnline given the linear1 weight.

    w: (D_out, D_in) in PyTorch nn.Linear layout.
    Transposes and zero-pads the weight to lane-dense (K_pad, N_pad) exactly
    once, here, outside the hot path. Returns a jitted forward(x) -> (N, D_out).
    """
    d_out, d_in = w.shape

    # Tile sizes: lane/K dims padded to multiples of 128, rows to multiples of 8.
    tn_eff = min(tn, _round_up(d_out, 128))
    tk_eff = min(tk, _round_up(d_in, 128))
    k_pad = _round_up(d_in, tk_eff)
    n_pad = _round_up(d_out, tn_eff)

    w_t = jnp.transpose(w)  # (D_in, D_out) -- done ONCE
    w_t_pad = jnp.pad(w_t, ((0, k_pad - d_in), (0, n_pad - d_out)))
    if compute_dtype is not None:
        w_t_pad = w_t_pad.astype(compute_dtype)
    w_t_pad = jax.device_put(w_t_pad)

    def forward(x):
        m, k = x.shape
        assert k == d_in, f"expected x last dim {d_in}, got {k}"
        tm_eff = min(tm, _round_up(m, 8))
        m_pad = _round_up(m, tm_eff)
        x_c = x if compute_dtype is None else x.astype(compute_dtype)
        x_padded = jnp.pad(x_c, ((0, m_pad - m), (0, k_pad - k)))
        y_pad = _tiled_linear(x_padded, w_t_pad, tm_eff, tn_eff, tk_eff)
        return y_pad[:m, :d_out].astype(x.dtype)

    return jax.jit(forward)


def init_params(key, d_in, h, d_out):
    """Deterministic params matching the module's __init__ shapes.

    Only linear1's weight participates in forward(); Conv1/Conv2/PReLU params
    are created for shape fidelity but are dead code in forward().
    """
    k1, k2, k3 = jax.random.split(key, 3)
    bound = 1.0 / jnp.sqrt(d_in)
    return {
        # nn.Linear(D_in, D_out, bias=False): weight (D_out, D_in)
        "linear1_w": jax.random.uniform(
            k1, (d_out, d_in), jnp.float32, -bound, bound
        ),
        # Unused in forward(); kept for shape documentation only.
        "conv1_w": jax.random.uniform(k2, (h, 1, d_in), jnp.float32, -bound, bound),
        "conv2_w": jax.random.uniform(
            k3, (d_out, h, 1), jnp.float32, -1.0 / jnp.sqrt(h), 1.0 / jnp.sqrt(h)
        ),
        "prelu_a": jnp.full((h,), 0.25, jnp.float32),
    }


if __name__ == "__main__":
    key = jax.random.PRNGKey(0)

    # --- Small shapes consistent with the module (D_in=32, H=16, D_out=8) ---
    D_in, H, D_out = 32, 16, 8
    N = 8

    kx, kp, kx2, kw2 = jax.random.split(key, 4)
    x = jax.random.normal(kx, (N, D_in), jnp.float32)
    params = init_params(kp, D_in, H, D_out)

    forward = make_cnn_online_forward(params["linear1_w"])
    y = jax.block_until_ready(forward(x))

    y_ref = x @ params["linear1_w"].T
    assert y.shape == (N, D_out)
    assert jnp.allclose(y, y_ref, atol=1e-5, rtol=1e-5)

    # --- Second, non-aligned shape to exercise padding + multi-tile grid ---
    D_in2, D_out2, N2 = 200, 130, 300
    x2 = jax.random.normal(kx2, (N2, D_in2), jnp.float32)
    w2 = jax.random.uniform(
        kw2, (D_out2, D_in2), jnp.float32, -1.0 / jnp.sqrt(D_in2), 1.0 / jnp.sqrt(D_in2)
    )
    forward2 = make_cnn_online_forward(w2)
    y2 = jax.block_until_ready(forward2(x2))
    y2_ref = x2 @ w2.T
    assert y2.shape == (N2, D_out2)
    assert jnp.allclose(y2, y2_ref, atol=1e-4, rtol=1e-4)

    print("KERNEL_OK")
</pallas_src>

<mosaic_0001>
module attributes {stable_mosaic.version = 11 : i64} {
  func.func @_matmul_kernel(%arg0: i32, %arg1: i32, %arg2: i32, %arg3: memref<8x128xf32, #tpu.memory_space<vmem>>, %arg4: memref<128x128xf32, #tpu.memory_space<vmem>>, %arg5: memref<8x128xf32, #tpu.memory_space<vmem>>, %arg6: memref<8x128xf32, #tpu.memory_space<vmem>>) attributes {dimension_semantics = [#tpu.dimension_semantics<parallel>, #tpu.dimension_semantics<parallel>, #tpu.dimension_semantics<arbitrary>], iteration_bounds = array<i64: 1, 1, 1>, scalar_prefetch = 0 : i64, scratch_operands = 1 : i64, tpu.core_type = #tpu.core_type<tc>, window_params = [{transform_indices = @transform_0, window_bounds = array<i64: 8, 128>}, {transform_indices = @transform_1, window_bounds = array<i64: 128, 128>}, {transform_indices = @transform_2, window_bounds = array<i64: 8, 128>}]} {
    %c0_i32 = arith.constant 0 : i32
    %0 = arith.cmpi eq, %arg2, %c0_i32 : i32
    %1 = arith.extui %0 : i1 to i32
    %c0_i32_0 = arith.constant 0 : i32
    %2 = arith.cmpi ne, %1, %c0_i32_0 : i32
    scf.if %2 {
      %cst_10 = arith.constant 0.000000e+00 : f32
      %12 = vector.broadcast %cst_10 : f32 to vector<8x128xf32>
      %c0_11 = arith.constant 0 : index
      %c0_12 = arith.constant 0 : index
      %13 = vector.load %arg6[%c0_11, %c0_12] : memref<8x128xf32, #tpu.memory_space<vmem>>, vector<8x128xf32>
      tpu.vector_store %arg6[%c0_11, %c0_12], %12 {strides = array<i32>} : memref<8x128xf32, #tpu.memory_space<vmem>>, vector<8x128xf32>,
    } else {
    }
    %c0 = arith.constant 0 : index
    %c0_1 = arith.constant 0 : index
    %3 = vector.load %arg6[%c0, %c0_1] : memref<8x128xf32, #tpu.memory_space<vmem>>, vector<8x128xf32>
    %c0_2 = arith.constant 0 : index
    %c0_3 = arith.constant 0 : index
    %4 = vector.load %arg3[%c0_2, %c0_3] : memref<8x128xf32, #tpu.memory_space<vmem>>, vector<8x128xf32>
    %c0_4 = arith.constant 0 : index
    %c0_5 = arith.constant 0 : index
    %5 = vector.load %arg4[%c0_4, %c0_5] : memref<128x128xf32, #tpu.memory_space<vmem>>, vector<128x128xf32>
    %cst = arith.constant dense<0.000000e+00> : vector<8x128xf32>
    %6 = tpu.matmul %4, %5, %cst {dimension_numbers = #tpu.dot_dimension_numbers<[1], [0], [0], [1], [0, 0, 1, 1], [], []>} : vector<8x128xf32>, vector<128x128xf32>, vector<8x128xf32> -> vector<8x128xf32>
    %7 = arith.addf %3, %6 : vector<8x128xf32>
    %c0_6 = arith.constant 0 : index
    %c0_7 = arith.constant 0 : index
    %8 = vector.load %arg6[%c0_6, %c0_7] : memref<8x128xf32, #tpu.memory_space<vmem>>, vector<8x128xf32>
    tpu.vector_store %arg6[%c0_6, %c0_7], %7 {strides = array<i32>} : memref<8x128xf32, #tpu.memory_space<vmem>>, vector<8x128xf32>,
    %c0_i32_8 = arith.constant 0 : i32
    %9 = arith.cmpi eq, %arg2, %c0_i32_8 : i32
    %10 = arith.extui %9 : i1 to i32
    %c0_i32_9 = arith.constant 0 : i32
    %11 = arith.cmpi ne, %10, %c0_i32_9 : i32
    scf.if %11 {
      %c0_10 = arith.constant 0 : index
      %c0_11 = arith.constant 0 : index
      %12 = vector.load %arg6[%c0_10, %c0_11] : memref<8x128xf32, #tpu.memory_space<vmem>>, vector<8x128xf32>
      %c0_12 = arith.constant 0 : index
      %c0_13 = arith.constant 0 : index
      %13 = vector.load %arg5[%c0_12, %c0_13] : memref<8x128xf32, #tpu.memory_space<vmem>>, vector<8x128xf32>
      tpu.vector_store %arg5[%c0_12, %c0_13], %12 {strides = array<i32>} : memref<8x128xf32, #tpu.memory_space<vmem>>, vector<8x128xf32>,
    } else {
    }
    return
  }
  func.func @transform_0(%arg0: i32, %arg1: i32, %arg2: i32) -> (i32, i32) {
    %c0_i32 = arith.constant 0 : i32
    return %arg0, %arg2 : i32, i32
  }
  func.func @transform_1(%arg0: i32, %arg1: i32, %arg2: i32) -> (i32, i32) {
    %c0_i32 = arith.constant 0 : i32
    return %arg2, %arg1 : i32, i32
  }
  func.func @transform_2(%arg0: i32, %arg1: i32, %arg2: i32) -> (i32, i32) {
    %c0_i32 = arith.constant 0 : i32
    return %arg0, %arg1 : i32, i32
  }
}

</mosaic_0001>

<llo_original>
// kernel: forward.1
$region0: #{forward.1}
  #allocation0 [shape = 'u32[]', space=smem, size = 0x4, offset = 0x4, fixed_abs, tag = 'smem constant byte address 0x4 - core index']
  #allocation1 [shape = 'u32[144,128]{1,0:T(1,128)}', space=vmem, size = 0x12000, scoped, tag = 'internal scratch']
  #allocation2 [shape = 'f32[8,128]{1,0:T(8,128)}', space=vmem, size = 0x1000, scoped, tag = 'scratch operand']
  %s0 = inlined_call_operand.vmem [shape: f32[8,128], index: 0, kind: input, shape index: {}]
  %s1 = inlined_call_operand.hbm [shape: f32[128,128], index: 1, kind: input, shape index: {}]
  %s2 = inlined_call_operand.hbm [shape: f32[8,128], index: 2, kind: output, shape index: {}]
  %s3 = sld [smem:[#allocation0]]
  $region30: #{forward.1} parent=0
    _
  %s5 = ssub.s32 1, %s3
  %s6 = scalar_select 0, %s5, %s3
  $region1: #{forward.1} parent=0
    #allocation3 [shape = 'u8[65536]{0}', space=vmem, size = 0x10000, scoped, tag = 'input window, operand 1, single buffered']
    #allocation4 [shape = 's32[1]{0}', space=sflag, size = 0x4, scoped, tag = 'scoped memory for forward.1']
    #allocation5 [shape = 's32[1]{0}', space=sflag, size = 0x4, scoped, tag = 'scoped memory for forward.1']
    #allocation6 [shape = 'u8[4096]{0}', space=vmem, size = 0x1000, scoped, tag = 'output window, operand 0, single buffered']
    %7 = vsyncpa [#allocation4], 0
    %8 = vsyncpa [#allocation5], 0
    // Predicated region
    $region2: #{forward.1} parent=1 // pred_check
      _
    $region3: #{forward.1} parent=1 // pred_check_branch
      %10 = sbr.rel (0) target = $region5
    $region4: #{forward.1} parent=1 // pred_region
      _
    $region5: #{forward.1} parent=1 // pred_fallthru
      _
    // Predicated region
    $region6: #{forward.1} parent=1 // pred_check
      _
    $region7: #{forward.1} parent=1 // pred_check_branch
      %12 = sbr.rel (0) target = $region9
    $region8: #{forward.1} parent=1 // pred_region
      %s14 = ssub.s32 2048, 2048
      %15 = vsyncadd [#allocation4], %s14
      %s16 = sshll.u32 [#allocation3], 4
      %s17 = int_to_ptr.vmem [resolvable:$true] %s16
      %22 = dma.hbm_to_vmem [thread:$0]  %s1, 2048, %s17, [#allocation4], 128, 128, 8
    $region9: #{forward.1} parent=1 // pred_fallthru
      _
    // Predicated region
    $region10: #{forward.1} parent=1 // pred_check
      _
    $region11: #{forward.1} parent=1 // pred_check_branch
      %24 = sbr.rel (0) target = $region13
    $region12: #{forward.1} parent=1 // pred_region
      %25 = dma.done [#allocation4], 2048
    $region13: #{forward.1} parent=1 // pred_fallthru
      _
    %p26 = scmp.eq.s32.totalorder 0, 0
    // Predicated region
    $region14: #{forward.1} parent=1 // pred_check
      %p27 = pneg %p26
    $region15: #{forward.1} parent=1 // pred_check_branch
      %29 = sbr.rel (%p27) target = $region17
    $region16: #{forward.1} parent=1 // pred_region
      %30 = vst [vmem:[#allocation2] sm:$0xff] 0.0
    $region17: #{forward.1} parent=1 // pred_fallthru
      _
    %v31 = vld [vmem:[#allocation2] sm:$0xff]
    %v32 = vld [vmem:[%s0] sm:$0xff]
    %v33 = vld [vmem:[#allocation3] sm:$0xff]
    %v34 = vld [vmem:[#allocation3 + $0x8] sm:$0xff]
    %v35 = vld [vmem:[#allocation3 + $0x10] sm:$0xff]
    %v36 = vld [vmem:[#allocation3 + $0x18] sm:$0xff]
    %v37 = vld [vmem:[#allocation3 + $0x20] sm:$0xff]
    %v38 = vld [vmem:[#allocation3 + $0x28] sm:$0xff]
    %v39 = vld [vmem:[#allocation3 + $0x30] sm:$0xff]
    %v40 = vld [vmem:[#allocation3 + $0x38] sm:$0xff]
    %v41 = vld [vmem:[#allocation3 + $0x40] sm:$0xff]
    %v42 = vld [vmem:[#allocation3 + $0x48] sm:$0xff]
    %v43 = vld [vmem:[#allocation3 + $0x50] sm:$0xff]
    %v44 = vld [vmem:[#allocation3 + $0x58] sm:$0xff]
    %v45 = vld [vmem:[#allocation3 + $0x60] sm:$0xff]
    %v46 = vld [vmem:[#allocation3 + $0x68] sm:$0xff]
    %v47 = vld [vmem:[#allocation3 + $0x70] sm:$0xff]
    %v48 = vld [vmem:[#allocation3 + $0x78] sm:$0xff]
    %49 = vmatprep.subr.mxu0 0.0
    %50 = vmatpush1.msra.mxu0 %v33
    %51 = vmatprep.subr.mxu0 0.0
    %52 = vmatpush1.msra.mxu0 %v34
    %53 = vmatprep.subr.mxu0 0.0
    %54 = vmatpush1.msra.mxu0 %v35
    %55 = vmatprep.subr.mxu0 0.0
    %56 = vmatpush1.msra.mxu0 %v36
    %57 = vmatprep.subr.mxu0 0.0
    %58 = vmatpush1.msra.mxu0 %v37
    %59 = vmatprep.subr.mxu0 0.0
    %60 = vmatpush1.msra.mxu0 %v38
    %61 = vmatprep.subr.mxu0 0.0
    %62 = vmatpush1.msra.mxu0 %v39
    %63 = vmatprep.subr.mxu0 0.0
    %64 = vmatpush1.msra.mxu0 %v40
    %65 = vmatprep.subr.mxu0 0.0
    %66 = vmatpush1.msra.mxu0 %v41
    %67 = vmatprep.subr.mxu0 0.0
    %68 = vmatpush1.msra.mxu0 %v42
    %69 = vmatprep.subr.mxu0 0.0
    %70 = vmatpush1.msra.mxu0 %v43
    %71 = vmatprep.subr.mxu0 0.0
    %72 = vmatpush1.msra.mxu0 %v44
    %73 = vmatprep.subr.mxu0 0.0
    %74 = vmatpush1.msra.mxu0 %v45
    %75 = vmatprep.subr.mxu0 0.0
    %76 = vmatpush1.msra.mxu0 %v46
    %77 = vmatprep.subr.mxu0 0.0
    %78 = vmatpush1.msra.mxu0 %v47
    %79 = vmatprep.subr.mxu0 0.0
    %80 = vmatpush1.msra.mxu0 %v48
    %81 = vmatprep.subr.mxu0 0.0
    %82 = vmatpush1.msra.mxu0 0.0
    %83 = vmatprep.subr.mxu0 0.0
    %84 = vmatpush1.msra.mxu0 0.0
    %85 = vmatprep.subr.mxu0 0.0
    %86 = vmatpush1.msra.mxu0 0.0
    %87 = vmatprep.subr.mxu0 0.0
    %88 = vmatpush1.msra.mxu0 0.0
    %89 = vmatprep.subr.mxu0 0.0
    %90 = vmatpush1.msra.mxu0 0.0
    %91 = vmatprep.subr.mxu0 0.0
    %92 = vmatpush1.msra.mxu0 0.0
    %93 = vmatprep.subr.mxu0 0.0
    %94 = vmatpush1.msra.mxu0 0.0
    %95 = vmatprep.subr.mxu0 0.0
    %96 = vmatpush1.msra.mxu0 0.0
    %97 = vmatprep.subr.mxu0 0.0
    %98 = vmatpush1.msra.mxu0 0.0
    %99 = vmatprep.subr.mxu0 0.0
    %100 = vmatpush1.msra.mxu0 0.0
    %101 = vmatprep.subr.mxu0 0.0
    %102 = vmatpush1.msra.mxu0 0.0
    %103 = vmatprep.subr.mxu0 0.0
    %104 = vmatpush1.msra.mxu0 0.0
    %105 = vmatprep.subr.mxu0 0.0
    %106 = vmatpush1.msra.mxu0 0.0
    %107 = vmatprep.subr.mxu0 0.0
    %108 = vmatpush1.msra.mxu0 0.0
    %109 = vmatprep.subr.mxu0 0.0
    %110 = vmatpush1.msra.mxu0 0.0
    %111 = vmatprep.subr.mxu0 0.0
    %112 = vmatpush1.msra.mxu0 0.0
    %113 = vmatprep.mubr.f32.mxu0 0.0
    %114 = vmatmul.mubr.f32.gmra.mrb[0].mxu0 %v32
    %v115 = vpop.f32.mrb[0].mxu0
    %v116 = vadd.f32 0.0, %v115
    %v117 = vpop.f32.mrb[0].mxu0
    %118 = vdwg.mxu0
    %v119 = vadd.f32 %v31, %v116
    %120 = vst [vmem:[#allocation2] sm:$0xff] %v119
    // Predicated region
    $region18: #{forward.1} parent=1 // pred_check
      %p121 = pneg %p26
    $region19: #{forward.1} parent=1 // pred_check_branch
      %123 = sbr.rel (%p121) target = $region21
    $region20: #{forward.1} parent=1 // pred_region
      %v124 = vld [vmem:[#allocation2] sm:$0xff]
      %125 = vst [vmem:[#allocation6] sm:$0xff] %v124
    $region21: #{forward.1} parent=1 // pred_fallthru
      _
    // Predicated region
    $region22: #{forward.1} parent=1 // pred_check
      _
    $region23: #{forward.1} parent=1 // pred_check_branch
      %127 = sbr.rel (0) target = $region25
    $region24: #{forward.1} parent=1 // pred_region
      %s129 = ssub.s32 128, 128
      %130 = vsyncadd [#allocation5], %s129
      %s132 = sshll.u32 [#allocation6], 4
      %s133 = int_to_ptr.vmem [resolvable:$true] %s132
      %135 = dma.vmem_to_hbm [thread:$0]  %s133, 128, %s2, [#allocation5]
    $region25: #{forward.1} parent=1 // pred_fallthru
      _
    // Predicated region
    $region26: #{forward.1} parent=1 // pred_check
      _
    $region27: #{forward.1} parent=1 // pred_check_branch
      %137 = sbr.rel (0) target = $region29
    $region28: #{forward.1} parent=1 // pred_region
      %138 = dma.done [#allocation5], 128
    $region29: #{forward.1} parent=1 // pred_fallthru
      _
    %139 = vsyncpa [#allocation4], 1
    %140 = vsyncpa [#allocation5], 1

</llo_original>
